<compile_context>
chip_gen: v7x
topology: tpu7x:2x2x1
jax: 0.10.0
libtpu: 0.0.40
codegen_flags: <defaults>
</compile_context>

<pallas_src>
import functools

import jax
import jax.numpy as jnp
from jax import lax
from jax.experimental import pallas as pl
from jax.experimental.pallas import tpu as pltpu

LN_EPS = 1e-5          # torch.nn.LayerNorm default
LEAKY_SLOPE = 0.01     # torch.nn.LeakyReLU(negative_slope=0.01)


def _layernorm(x, gamma, beta):
    # PyTorch LayerNorm: biased variance over the last dim, eps inside rsqrt.
    mean = jnp.mean(x, axis=-1, keepdims=True)
    xc = x - mean
    var = jnp.mean(xc * xc, axis=-1, keepdims=True)
    inv = lax.rsqrt(var + LN_EPS)
    return xc * inv * gamma + beta


def _stable_sigmoid(x):
    # exp() argument is always <= 0 -> no inf intermediates.
    # Single EUP reciprocal instead of two divides.
    e = jnp.exp(-jnp.abs(x))
    r = pl.reciprocal(1.0 + e, approx=True)
    return jnp.where(x >= 0, r, e * r)


def _transition_kernel(
    obs_ref, act_ref,                 # activation tiles (gridded over batch)
    w1_ref, ln1_ref,                  # layer 1: full W1 (bf16) + packed (b1, g1, be1)
    w2_ref, ln2_ref,                  # layer 2: W2 (bf16) + packed (b2, g2, be2)
    wh_ref, bh_ref,                   # fused heads: (H, head_pad) bf16, (1, head_pad) f32
    out_ref,                          # fused lane-dense output tile (tile_b, head_pad)
    x_scratch,                        # VMEM scratch (tile_b, obs_dim+action_dim) f32
):
    od = obs_ref.shape[-1]

    # --- in-kernel concat(obs, action) via VMEM scratch (one K=in_dim matmul) ---
    x_scratch[:, :od] = obs_ref[...]
    x_scratch[:, od:] = act_ref[...]
    x = x_scratch[...].astype(jnp.bfloat16)

    # --- layer 1: Linear -> LayerNorm -> LeakyReLU ---
    ln1 = ln1_ref[...]
    h1 = jnp.dot(x, w1_ref[...], preferred_element_type=jnp.float32) + ln1[0:1, :]
    h1 = _layernorm(h1, ln1[1:2, :], ln1[2:3, :])
    h1 = jnp.where(h1 > 0, h1, LEAKY_SLOPE * h1)

    # --- layer 2: Linear -> LayerNorm -> ReLU ---
    ln2 = ln2_ref[...]
    h2 = (jnp.dot(h1.astype(jnp.bfloat16), w2_ref[...],
                  preferred_element_type=jnp.float32)
          + ln2[0:1, :])
    h2 = _layernorm(h2, ln2[1:2, :], ln2[2:3, :])
    feat = jnp.maximum(h2, 0.0)

    # --- fused heads: [next_state | reward | terminal_logit | zero-pad] ---
    head = (jnp.dot(feat.astype(jnp.bfloat16), wh_ref[...],
                    preferred_element_type=jnp.float32)
            + bh_ref[...])
    col = lax.broadcasted_iota(jnp.int32, head.shape, 1)
    # sigmoid only on the terminal column (index obs_dim + 1)
    head = jnp.where(col == od + 1, _stable_sigmoid(head), head)

    out_ref[...] = head.astype(out_ref.dtype)


def init_params(key, obs_dim, action_dim, network_layers=(64, 64)):
    """Deterministic parameter init (PyTorch-like uniform(-1/sqrt(fan_in), ...))."""
    params = {}
    in_dim = obs_dim + action_dim
    keys = jax.random.split(key, 2 * (len(network_layers) + 3))
    ki = 0

    def linear(kw, kb, fan_in, fan_out):
        bound = 1.0 / jnp.sqrt(fan_in)
        w = jax.random.uniform(kw, (fan_in, fan_out), jnp.float32, -bound, bound)
        b = jax.random.uniform(kb, (1, fan_out), jnp.float32, -bound, bound)
        return w, b

    for i, h in enumerate(network_layers):
        w, b = linear(keys[ki], keys[ki + 1], in_dim, h)
        ki += 2
        params[f"w{i+1}"] = w
        params[f"b{i+1}"] = b
        params[f"g{i+1}"] = jnp.ones((1, h), jnp.float32)    # LayerNorm weight
        params[f"be{i+1}"] = jnp.zeros((1, h), jnp.float32)  # LayerNorm bias
        in_dim = h

    params["wns"], params["bns"] = linear(keys[ki], keys[ki + 1], in_dim, obs_dim); ki += 2
    params["wr"], params["br"] = linear(keys[ki], keys[ki + 1], in_dim, 1); ki += 2
    params["wt"], params["bt"] = linear(keys[ki], keys[ki + 1], in_dim, 1); ki += 2
    return params


def _round_up(x, m):
    return ((x + m - 1) // m) * m


@functools.partial(jax.jit, static_argnames=("obs_dim", "block_b"))
def simple_transition_forward(obs, action, params, *, obs_dim, block_b=2048):
    """obs: (B, obs_dim), action: (B, action_dim) -> (next_state, reward, terminal)."""
    obs = obs.astype(jnp.float32)
    action = action.astype(jnp.float32)
    batch = obs.shape[0]
    action_dim = action.shape[1]
    in_dim = obs_dim + action_dim
    head_w = obs_dim + 2                       # [next_state | reward | terminal]
    head_pad = _round_up(head_w, 128)          # lane-dense output slab

    # --- pack parameters (tiny, done once per call under jit) ---
    w1 = params["w1"].astype(jnp.bfloat16)                                      # (in_dim, H1)
    w2 = params["w2"].astype(jnp.bfloat16)                                      # (H1, H2)
    ln1 = jnp.concatenate([params["b1"], params["g1"], params["be1"]], axis=0)  # (3, H1)
    ln2 = jnp.concatenate([params["b2"], params["g2"], params["be2"]], axis=0)  # (3, H2)
    wh = jnp.concatenate([params["wns"], params["wr"], params["wt"]], axis=1)   # (H2, head_w)
    bh = jnp.concatenate([params["bns"], params["br"], params["bt"]], axis=1)   # (1, head_w)
    wh = jnp.pad(wh, ((0, 0), (0, head_pad - head_w))).astype(jnp.bfloat16)     # (H2, head_pad)
    bh = jnp.pad(bh, ((0, 0), (0, head_pad - head_w)))                          # (1, head_pad) f32

    # --- batch tiling: >=2 grid steps when possible (v7x two-TC sharding),
    #     block_b rows per step, params stay VMEM-resident across steps ---
    tile_b = min(block_b, _round_up(pl.cdiv(batch, 2), 8))
    grid = (pl.cdiv(batch, tile_b),)

    def act_spec(feat):
        return pl.BlockSpec((tile_b, feat), lambda i: (i, 0))

    def resident(arr):
        return pl.BlockSpec(arr.shape, lambda i: (0, 0))

    fused = pl.pallas_call(
        _transition_kernel,
        out_shape=jax.ShapeDtypeStruct((batch, head_pad), jnp.float32),
        grid=grid,
        in_specs=[
            act_spec(obs_dim),       # obs (gridded)
            act_spec(action_dim),    # action (gridded)
            resident(w1),
            resident(ln1),
            resident(w2),
            resident(ln2),
            resident(wh),
            resident(bh),
        ],
        out_specs=pl.BlockSpec((tile_b, head_pad), lambda i: (i, 0)),
        scratch_shapes=[pltpu.VMEM((tile_b, in_dim), jnp.float32)],
        compiler_params=pltpu.CompilerParams(
            dimension_semantics=("parallel",),
            vmem_limit_bytes=32 * 1024 * 1024),
    )(obs, action, w1, ln1, w2, ln2, wh, bh)

    next_state = fused[:, :obs_dim]
    reward = fused[:, obs_dim:obs_dim + 1]
    terminal = fused[:, obs_dim + 1:obs_dim + 2]
    return next_state, reward, terminal


def _reference_forward(obs, action, params):
    """Pure-JAX f32 reference for a correctness check."""
    x = jnp.concatenate([obs, action], axis=-1).astype(jnp.float32)
    h = x @ params["w1"] + params["b1"]
    h = _layernorm(h, params["g1"], params["be1"])
    h = jnp.where(h > 0, h, LEAKY_SLOPE * h)
    h = h @ params["w2"] + params["b2"]
    h = _layernorm(h, params["g2"], params["be2"])
    feat = jnp.maximum(h, 0.0)
    ns = feat @ params["wns"] + params["bns"]
    rw = feat @ params["wr"] + params["br"]
    tm = jax.nn.sigmoid(feat @ params["wt"] + params["bt"])
    return ns, rw, tm


if __name__ == "__main__":
    obs_dim, action_dim, batch = 16, 4, 16

    key = jax.random.PRNGKey(0)
    k_params, k_obs, k_act = jax.random.split(key, 3)

    params = init_params(k_params, obs_dim, action_dim)
    obs = jax.random.normal(k_obs, (batch, obs_dim), jnp.float32)
    action = jax.random.normal(k_act, (batch, action_dim), jnp.float32)

    # block_b=8 so the 1-D batch grid has 2 steps even at this tiny size.
    next_state, reward, terminal = simple_transition_forward(
        obs, action, params, obs_dim=obs_dim, block_b=8
    )
    jax.block_until_ready((next_state, reward, terminal))

    # sanity check against pure-JAX f32 reference (bf16 matmuls -> looser tol)
    ref_ns, ref_r, ref_t = _reference_forward(obs, action, params)
    assert next_state.shape == (batch, obs_dim)
    assert reward.shape == (batch, 1)
    assert terminal.shape == (batch, 1)
    assert jnp.allclose(next_state, ref_ns, atol=2e-2, rtol=2e-2)
    assert jnp.allclose(reward, ref_r, atol=2e-2, rtol=2e-2)
    assert jnp.allclose(terminal, ref_t, atol=2e-2, rtol=2e-2)

    print("KERNEL_OK")
</pallas_src>

<mosaic_0001>
module attributes {stable_mosaic.version = 11 : i64} {
  func.func @_transition_kernel(%arg0: i32, %arg1: memref<8x16xf32, #tpu.memory_space<vmem>>, %arg2: memref<8x4xf32, #tpu.memory_space<vmem>>, %arg3: memref<20x64xbf16, #tpu.memory_space<vmem>>, %arg4: memref<3x64xf32, #tpu.memory_space<vmem>>, %arg5: memref<64x64xbf16, #tpu.memory_space<vmem>>, %arg6: memref<3x64xf32, #tpu.memory_space<vmem>>, %arg7: memref<64x128xbf16, #tpu.memory_space<vmem>>, %arg8: memref<1x128xf32, #tpu.memory_space<vmem>>, %arg9: memref<8x128xf32, #tpu.memory_space<vmem>>, %arg10: memref<8x20xf32, #tpu.memory_space<vmem>>) attributes {dimension_semantics = [#tpu.dimension_semantics<parallel>], iteration_bounds = array<i64: 2>, scalar_prefetch = 0 : i64, scratch_operands = 1 : i64, tpu.core_type = #tpu.core_type<tc>, window_params = [{transform_indices = @transform_0, window_bounds = array<i64: 8, 16>}, {transform_indices = @transform_1, window_bounds = array<i64: 8, 4>}, {pipeline_mode = #tpu.pipeline_mode<synchronous>, transform_indices = @transform_2, window_bounds = array<i64: 20, 64>}, {pipeline_mode = #tpu.pipeline_mode<synchronous>, transform_indices = @transform_3, window_bounds = array<i64: 3, 64>}, {pipeline_mode = #tpu.pipeline_mode<synchronous>, transform_indices = @transform_4, window_bounds = array<i64: 64, 64>}, {pipeline_mode = #tpu.pipeline_mode<synchronous>, transform_indices = @transform_5, window_bounds = array<i64: 3, 64>}, {pipeline_mode = #tpu.pipeline_mode<synchronous>, transform_indices = @transform_6, window_bounds = array<i64: 64, 128>}, {pipeline_mode = #tpu.pipeline_mode<synchronous>, transform_indices = @transform_7, window_bounds = array<i64: 1, 128>}, {transform_indices = @transform_8, window_bounds = array<i64: 8, 128>}]} {
    %c0 = arith.constant 0 : index
    %c0_0 = arith.constant 0 : index
    %0 = vector.load %arg1[%c0, %c0_0] : memref<8x16xf32, #tpu.memory_space<vmem>>, vector<8x16xf32>
    %c0_1 = arith.constant 0 : index
    %c0_2 = arith.constant 0 : index
    %1 = vector.load %arg10[%c0_1, %c0_2] : memref<8x20xf32, #tpu.memory_space<vmem>>, vector<8x16xf32>
    tpu.vector_store %arg10[%c0_1, %c0_2], %0 {strides = array<i32>} : memref<8x20xf32, #tpu.memory_space<vmem>>, vector<8x16xf32>,
    %c0_3 = arith.constant 0 : index
    %c0_4 = arith.constant 0 : index
    %2 = vector.load %arg2[%c0_3, %c0_4] : memref<8x4xf32, #tpu.memory_space<vmem>>, vector<8x4xf32>
    %c0_5 = arith.constant 0 : index
    %c16 = arith.constant 16 : index
    %3 = vector.load %arg10[%c0_5, %c16] : memref<8x20xf32, #tpu.memory_space<vmem>>, vector<8x4xf32>
    tpu.vector_store %arg10[%c0_5, %c16], %2 {strides = array<i32>} : memref<8x20xf32, #tpu.memory_space<vmem>>, vector<8x4xf32>,
    %c0_6 = arith.constant 0 : index
    %c0_7 = arith.constant 0 : index
    %4 = vector.load %arg10[%c0_6, %c0_7] : memref<8x20xf32, #tpu.memory_space<vmem>>, vector<8x20xf32>
    %5 = arith.truncf %4 : vector<8x20xf32> to vector<8x20xbf16>
    %c0_8 = arith.constant 0 : index
    %c0_9 = arith.constant 0 : index
    %6 = vector.load %arg4[%c0_8, %c0_9] : memref<3x64xf32, #tpu.memory_space<vmem>>, vector<3x64xf32>
    %c0_10 = arith.constant 0 : index
    %c0_11 = arith.constant 0 : index
    %7 = vector.load %arg3[%c0_10, %c0_11] : memref<20x64xbf16, #tpu.memory_space<vmem>>, vector<20x64xbf16>
    %cst = arith.constant dense<0.000000e+00> : vector<8x64xf32>
    %8 = tpu.matmul %5, %7, %cst {dimension_numbers = #tpu.dot_dimension_numbers<[1], [0], [0], [1], [0, 0, 1, 1], [], []>} : vector<8x20xbf16>, vector<20x64xbf16>, vector<8x64xf32> -> vector<8x64xf32>
    %9 = vector.extract_strided_slice %6 {offsets = [0, 0], sizes = [1, 64], strides = [1, 1]} : vector<3x64xf32> to vector<1x64xf32>
    %10 = vector.broadcast %9 : vector<1x64xf32> to vector<8x64xf32>
    %11 = arith.addf %8, %10 : vector<8x64xf32>
    %12 = vector.extract_strided_slice %6 {offsets = [1, 0], sizes = [1, 64], strides = [1, 1]} : vector<3x64xf32> to vector<1x64xf32>
    %13 = vector.extract_strided_slice %6 {offsets = [2, 0], sizes = [1, 64], strides = [1, 1]} : vector<3x64xf32> to vector<1x64xf32>
    %cst_12 = arith.constant dense<0.000000e+00> : vector<8xf32>
    %14 = vector.multi_reduction <add>, %11, %cst_12 [1] : vector<8x64xf32> to vector<8xf32>
    %15 = vector.shape_cast %14 : vector<8xf32> to vector<8x1xf32>
    %cst_13 = arith.constant 6.400000e+01 : f32
    %16 = vector.broadcast %cst_13 : f32 to vector<8x1xf32>
    %17 = arith.divf %15, %16 : vector<8x1xf32>
    %18 = vector.broadcast %17 : vector<8x1xf32> to vector<8x64xf32>
    %19 = arith.subf %11, %18 : vector<8x64xf32>
    %20 = arith.mulf %19, %19 : vector<8x64xf32>
    %cst_14 = arith.constant dense<0.000000e+00> : vector<8xf32>
    %21 = vector.multi_reduction <add>, %20, %cst_14 [1] : vector<8x64xf32> to vector<8xf32>
    %22 = vector.shape_cast %21 : vector<8xf32> to vector<8x1xf32>
    %cst_15 = arith.constant 6.400000e+01 : f32
    %23 = vector.broadcast %cst_15 : f32 to vector<8x1xf32>
    %24 = arith.divf %22, %23 : vector<8x1xf32>
    %cst_16 = arith.constant 9.99999974E-6 : f32
    %25 = vector.broadcast %cst_16 : f32 to vector<8x1xf32>
    %26 = arith.addf %24, %25 : vector<8x1xf32>
    %27 = math.rsqrt %26 : vector<8x1xf32>
    %28 = vector.broadcast %27 : vector<8x1xf32> to vector<8x64xf32>
    %29 = arith.mulf %19, %28 : vector<8x64xf32>
    %30 = vector.broadcast %12 : vector<1x64xf32> to vector<8x64xf32>
    %31 = arith.mulf %29, %30 : vector<8x64xf32>
    %32 = vector.broadcast %13 : vector<1x64xf32> to vector<8x64xf32>
    %33 = arith.addf %31, %32 : vector<8x64xf32>
    %cst_17 = arith.constant 0.000000e+00 : f32
    %34 = vector.broadcast %cst_17 : f32 to vector<8x64xf32>
    %35 = arith.cmpf ogt, %33, %34 : vector<8x64xf32>
    %cst_18 = arith.constant 0.00999999977 : f32
    %36 = vector.broadcast %cst_18 : f32 to vector<8x64xf32>
    %37 = arith.mulf %36, %33 : vector<8x64xf32>
    %38 = arith.select %35, %33, %37 : vector<8x64xi1>, vector<8x64xf32>
    %c0_19 = arith.constant 0 : index
    %c0_20 = arith.constant 0 : index
    %39 = vector.load %arg6[%c0_19, %c0_20] : memref<3x64xf32, #tpu.memory_space<vmem>>, vector<3x64xf32>
    %40 = arith.truncf %38 : vector<8x64xf32> to vector<8x64xbf16>
    %c0_21 = arith.constant 0 : index
    %c0_22 = arith.constant 0 : index
    %41 = vector.load %arg5[%c0_21, %c0_22] : memref<64x64xbf16, #tpu.memory_space<vmem>>, vector<64x64xbf16>
    %cst_23 = arith.constant dense<0.000000e+00> : vector<8x64xf32>
    %42 = tpu.matmul %40, %41, %cst_23 {dimension_numbers = #tpu.dot_dimension_numbers<[1], [0], [0], [1], [0, 0, 1, 1], [], []>} : vector<8x64xbf16>, vector<64x64xbf16>, vector<8x64xf32> -> vector<8x64xf32>
    %43 = vector.extract_strided_slice %39 {offsets = [0, 0], sizes = [1, 64], strides = [1, 1]} : vector<3x64xf32> to vector<1x64xf32>
    %44 = vector.broadcast %43 : vector<1x64xf32> to vector<8x64xf32>
    %45 = arith.addf %42, %44 : vector<8x64xf32>
    %46 = vector.extract_strided_slice %39 {offsets = [1, 0], sizes = [1, 64], strides = [1, 1]} : vector<3x64xf32> to vector<1x64xf32>
    %47 = vector.extract_strided_slice %39 {offsets = [2, 0], sizes = [1, 64], strides = [1, 1]} : vector<3x64xf32> to vector<1x64xf32>
    %cst_24 = arith.constant dense<0.000000e+00> : vector<8xf32>
    %48 = vector.multi_reduction <add>, %45, %cst_24 [1] : vector<8x64xf32> to vector<8xf32>
    %49 = vector.shape_cast %48 : vector<8xf32> to vector<8x1xf32>
    %cst_25 = arith.constant 6.400000e+01 : f32
    %50 = vector.broadcast %cst_25 : f32 to vector<8x1xf32>
    %51 = arith.divf %49, %50 : vector<8x1xf32>
    %52 = vector.broadcast %51 : vector<8x1xf32> to vector<8x64xf32>
    %53 = arith.subf %45, %52 : vector<8x64xf32>
    %54 = arith.mulf %53, %53 : vector<8x64xf32>
    %cst_26 = arith.constant dense<0.000000e+00> : vector<8xf32>
    %55 = vector.multi_reduction <add>, %54, %cst_26 [1] : vector<8x64xf32> to vector<8xf32>
    %56 = vector.shape_cast %55 : vector<8xf32> to vector<8x1xf32>
    %cst_27 = arith.constant 6.400000e+01 : f32
    %57 = vector.broadcast %cst_27 : f32 to vector<8x1xf32>
    %58 = arith.divf %56, %57 : vector<8x1xf32>
    %cst_28 = arith.constant 9.99999974E-6 : f32
    %59 = vector.broadcast %cst_28 : f32 to vector<8x1xf32>
    %60 = arith.addf %58, %59 : vector<8x1xf32>
    %61 = math.rsqrt %60 : vector<8x1xf32>
    %62 = vector.broadcast %61 : vector<8x1xf32> to vector<8x64xf32>
    %63 = arith.mulf %53, %62 : vector<8x64xf32>
    %64 = vector.broadcast %46 : vector<1x64xf32> to vector<8x64xf32>
    %65 = arith.mulf %63, %64 : vector<8x64xf32>
    %66 = vector.broadcast %47 : vector<1x64xf32> to vector<8x64xf32>
    %67 = arith.addf %65, %66 : vector<8x64xf32>
    %cst_29 = arith.constant 0.000000e+00 : f32
    %68 = vector.broadcast %cst_29 : f32 to vector<8x64xf32>
    %69 = arith.maximumf %67, %68 : vector<8x64xf32>
    %70 = arith.truncf %69 : vector<8x64xf32> to vector<8x64xbf16>
    %c0_30 = arith.constant 0 : index
    %c0_31 = arith.constant 0 : index
    %71 = vector.load %arg7[%c0_30, %c0_31] : memref<64x128xbf16, #tpu.memory_space<vmem>>, vector<64x128xbf16>
    %cst_32 = arith.constant dense<0.000000e+00> : vector<8x128xf32>
    %72 = tpu.matmul %70, %71, %cst_32 {dimension_numbers = #tpu.dot_dimension_numbers<[1], [0], [0], [1], [0, 0, 1, 1], [], []>} : vector<8x64xbf16>, vector<64x128xbf16>, vector<8x128xf32> -> vector<8x128xf32>
    %c0_33 = arith.constant 0 : index
    %c0_34 = arith.constant 0 : index
    %73 = vector.load %arg8[%c0_33, %c0_34] : memref<1x128xf32, #tpu.memory_space<vmem>>, vector<1x128xf32>
    %74 = vector.broadcast %73 : vector<1x128xf32> to vector<8x128xf32>
    %75 = arith.addf %72, %74 : vector<8x128xf32>
    %76 = tpu.iota {dimensions = array<i32: 1>} : vector<8x128xi32>
    %c17_i32 = arith.constant 17 : i32
    %77 = vector.broadcast %c17_i32 : i32 to vector<8x128xi32>
    %78 = arith.cmpi eq, %76, %77 : vector<8x128xi32>
    %79 = math.absf %75 : vector<8x128xf32>
    %cst_35 = arith.constant 0.000000e+00 : f32
    %80 = vector.broadcast %cst_35 : f32 to vector<8x128xf32>
    %81 = arith.subf %80, %79 : vector<8x128xf32>
    %82 = math.exp %81 : vector<8x128xf32>
    %cst_36 = arith.constant 1.000000e+00 : f32
    %83 = vector.broadcast %cst_36 : f32 to vector<8x128xf32>
    %84 = arith.addf %83, %82 : vector<8x128xf32>
    %85 = tpu.reciprocal %84 {approx = true} : vector<8x128xf32> -> vector<8x128xf32>
    %cst_37 = arith.constant 0.000000e+00 : f32
    %86 = vector.broadcast %cst_37 : f32 to vector<8x128xf32>
    %87 = arith.cmpf oge, %75, %86 : vector<8x128xf32>
    %88 = arith.mulf %82, %85 : vector<8x128xf32>
    %89 = arith.select %87, %85, %88 : vector<8x128xi1>, vector<8x128xf32>
    %90 = arith.select %78, %89, %75 : vector<8x128xi1>, vector<8x128xf32>
    %c0_38 = arith.constant 0 : index
    %c0_39 = arith.constant 0 : index
    %91 = vector.load %arg9[%c0_38, %c0_39] : memref<8x128xf32, #tpu.memory_space<vmem>>, vector<8x128xf32>
    tpu.vector_store %arg9[%c0_38, %c0_39], %90 {strides = array<i32>} : memref<8x128xf32, #tpu.memory_space<vmem>>, vector<8x128xf32>,
    return
  }
  func.func @transform_0(%arg0: i32) -> (i32, i32) {
    %c0_i32 = arith.constant 0 : i32
    %c0_i32_0 = arith.constant 0 : i32
    return %arg0, %c0_i32 : i32, i32
  }
  func.func @transform_1(%arg0: i32) -> (i32, i32) {
    %c0_i32 = arith.constant 0 : i32
    %c0_i32_0 = arith.constant 0 : i32
    return %arg0, %c0_i32 : i32, i32
  }
  func.func @transform_2(%arg0: i32) -> (i32, i32) {
    %c0_i32 = arith.constant 0 : i32
    %c0_i32_0 = arith.constant 0 : i32
    %c0_i32_1 = arith.constant 0 : i32
    return %c0_i32, %c0_i32_0 : i32, i32
  }
  func.func @transform_3(%arg0: i32) -> (i32, i32) {
    %c0_i32 = arith.constant 0 : i32
    %c0_i32_0 = arith.constant 0 : i32
    %c0_i32_1 = arith.constant 0 : i32
    return %c0_i32, %c0_i32_0 : i32, i32
  }
  func.func @transform_4(%arg0: i32) -> (i32, i32) {
    %c0_i32 = arith.constant 0 : i32
    %c0_i32_0 = arith.constant 0 : i32
    %c0_i32_1 = arith.constant 0 : i32
    return %c0_i32, %c0_i32_0 : i32, i32
  }
  func.func @transform_5(%arg0: i32) -> (i32, i32) {
    %c0_i32 = arith.constant 0 : i32
    %c0_i32_0 = arith.constant 0 : i32
    %c0_i32_1 = arith.constant 0 : i32
    return %c0_i32, %c0_i32_0 : i32, i32
  }
  func.func @transform_6(%arg0: i32) -> (i32, i32) {
    %c0_i32 = arith.constant 0 : i32
    %c0_i32_0 = arith.constant 0 : i32
    %c0_i32_1 = arith.constant 0 : i32
    return %c0_i32, %c0_i32_0 : i32, i32
  }
  func.func @transform_7(%arg0: i32) -> (i32, i32) {
    %c0_i32 = arith.constant 0 : i32
    %c0_i32_0 = arith.constant 0 : i32
    %c0_i32_1 = arith.constant 0 : i32
    return %c0_i32, %c0_i32_0 : i32, i32
  }
  func.func @transform_8(%arg0: i32) -> (i32, i32) {
    %c0_i32 = arith.constant 0 : i32
    %c0_i32_0 = arith.constant 0 : i32
    return %arg0, %c0_i32 : i32, i32
  }
}

</mosaic_0001>

<llo_original>
// kernel: simple_transition_forward.1
$region0: #{simple_transition_forward.1}
  #allocation0 [shape = 'u32[]', space=smem, size = 0x4, offset = 0x4, fixed_abs, tag = 'smem constant byte address 0x4 - core index']
  #allocation1 [shape = 'u32[144,128]{1,0:T(1,128)}', space=vmem, size = 0x12000, scoped, tag = 'internal scratch']
  #allocation2 [shape = 'f32[8,20]{1,0:T(8,128)}', space=vmem, size = 0x1000, scoped, tag = 'scratch operand']
  %s0 = inlined_call_operand.vmem [shape: f32[16,16], index: 0, kind: input, shape index: {}]
  %s1 = inlined_call_operand.vmem [shape: f32[16,4], index: 1, kind: input, shape index: {}]
  %s2 = inlined_call_operand.vmem [shape: bf16[20,64], index: 2, kind: input, shape index: {}]
  %s3 = inlined_call_operand.vmem [shape: f32[3,64], index: 3, kind: input, shape index: {}]
  %s4 = inlined_call_operand.vmem [shape: bf16[64,64], index: 4, kind: input, shape index: {}]
  %s5 = inlined_call_operand.vmem [shape: f32[3,64], index: 5, kind: input, shape index: {}]
  %s6 = inlined_call_operand.vmem [shape: bf16[64,128], index: 6, kind: input, shape index: {}]
  %s7 = inlined_call_operand.vmem [shape: f32[1,128], index: 7, kind: input, shape index: {}]
  %s8 = inlined_call_operand.vmem [shape: f32[16,128], index: 8, kind: output, shape index: {}]
  %s9 = sld [smem:[#allocation0]]
  $region65: #{simple_transition_forward.1} parent=0
    _
  %s11 = ssub.s32 1, %s9
  %s12 = scalar_select 0, %s11, %s9
  loop: start=0, step=1, limit=4
  $region2: #{simple_transition_forward.1} parent=0 // loop_pre_header
    _
  $region3: #{simple_transition_forward.1} parent=0 // loop_header
    %s14 = sphi 0, %s18
    %p15 = scmp.ge.s32.totalorder %s14, 4
    %s24 = sphi 0, %s26
    %s27 = sphi 0, %s24
    %s28 = sphi 0, %s27
    %s44 = sphi 0, %s28
    %s50 = sphi 0, %s52
    %s53 = sphi 0, %s50
    %s54 = sphi 0, %s53
    %s70 = sphi 0, %s54
    %s74 = sphi 0, %s74
    %s76 = sphi 0, %s74
    %s77 = sphi 0, %s76
    %s91 = sphi 0, %s77
    %s95 = sphi 0, %s95
    %s97 = sphi 0, %s95
    %s98 = sphi 0, %s97
    %s112 = sphi 0, %s98
    %s116 = sphi 0, %s116
    %s118 = sphi 0, %s116
    %s119 = sphi 0, %s118
    %s133 = sphi 0, %s119
    %s137 = sphi 0, %s137
    %s139 = sphi 0, %s137
    %s140 = sphi 0, %s139
    %s154 = sphi 0, %s140
    %s158 = sphi 0, %s158
    %s160 = sphi 0, %s158
    %s161 = sphi 0, %s160
    %s175 = sphi 0, %s161
    %s179 = sphi 0, %s179
    %s181 = sphi 0, %s179
    %s182 = sphi 0, %s181
    %s196 = sphi 0, %s182
    %s202 = sphi 0, %s204
    %s205 = sphi 0, %s202
    %s206 = sphi 0, %s205
    %s222 = sphi 0, %s206
  $region4: #{simple_transition_forward.1} parent=0 // loop_header_branch
    %17 = sbr.rel (%p15) target = $region8
  $region5: #{simple_transition_forward.1} parent=0 // loop_body
    %s19 = ssub.s32 %s14, 1
    %s20 = ssub.s32 %s14, 2
    %s21 = sadd.s32 %s14, 1
    %s22 = ssub.s32 %s14, %s21
    %p23 = scmp.eq.s32.totalorder %s22, 0
    %s25 = sadd.s32 %s24, 1
    %s26 = scalar_select %p23, %s24, %s25
    %p29 = pneg %p23
    %p30 = scmp.eq.s32.totalorder %s14, 1
    %p31 = por %p29, %p30
    %p32 = scmp.ne.s32.totalorder %s24, %s27
    %p33 = scmp.eq.s32.totalorder %s14, 0
    %p34 = por %p32, %p33
    %p35 = scmp.ne.s32.totalorder %s24, %s27
    %p36 = scmp.eq.s32.totalorder %s19, 1
    %p37 = por %p35, %p36
    %p38 = scmp.ne.s32.totalorder %s27, %s28
    %p39 = scmp.eq.s32.totalorder %s19, 0
    %p40 = por %p38, %p39
    %p41 = scmp.ne.s32.totalorder %s27, %s28
    %p42 = scmp.eq.s32.totalorder %s20, 1
    %p43 = por %p41, %p42
    %p45 = scmp.ne.s32.totalorder %s28, %s44
    %p46 = scmp.eq.s32.totalorder %s20, 0
    %p47 = por %p45, %p46
    %s48 = ssub.s32 %s14, %s21
    %p49 = scmp.eq.s32.totalorder %s48, 0
    %s51 = sadd.s32 %s50, 1
    %s52 = scalar_select %p49, %s50, %s51
    %p55 = pneg %p49
    %p56 = scmp.eq.s32.totalorder %s14, 1
    %p57 = por %p55, %p56
    %p58 = scmp.ne.s32.totalorder %s50, %s53
    %p59 = scmp.eq.s32.totalorder %s14, 0
    %p60 = por %p58, %p59
    %p61 = scmp.ne.s32.totalorder %s50, %s53
    %p62 = scmp.eq.s32.totalorder %s19, 1
    %p63 = por %p61, %p62
    %p64 = scmp.ne.s32.totalorder %s53, %s54
    %p65 = scmp.eq.s32.totalorder %s19, 0
    %p66 = por %p64, %p65
    %p67 = scmp.ne.s32.totalorder %s53, %s54
    %p68 = scmp.eq.s32.totalorder %s20, 1
    %p69 = por %p67, %p68
    %p71 = scmp.ne.s32.totalorder %s54, %s70
    %p72 = scmp.eq.s32.totalorder %s20, 0
    %p73 = por %p71, %p72
    %s75 = sadd.s32 %s74, 1
    %p78 = scmp.eq.s32.totalorder %s14, 1
    %p79 = scmp.ne.s32.totalorder %s74, %s76
    %p80 = scmp.eq.s32.totalorder %s14, 0
    %p81 = por %p79, %p80
    %p82 = scmp.ne.s32.totalorder %s74, %s76
    %p83 = scmp.eq.s32.totalorder %s19, 1
    %p84 = por %p82, %p83
    %p85 = scmp.ne.s32.totalorder %s76, %s77
    %p86 = scmp.eq.s32.totalorder %s19, 0
    %p87 = por %p85, %p86
    %p88 = scmp.ne.s32.totalorder %s76, %s77
    %p89 = scmp.eq.s32.totalorder %s20, 1
    %p90 = por %p88, %p89
    %p92 = scmp.ne.s32.totalorder %s77, %s91
    %p93 = scmp.eq.s32.totalorder %s20, 0
    %p94 = por %p92, %p93
    %s96 = sadd.s32 %s95, 1
    %p99 = scmp.eq.s32.totalorder %s14, 1
    %p100 = scmp.ne.s32.totalorder %s95, %s97
    %p101 = scmp.eq.s32.totalorder %s14, 0
    %p102 = por %p100, %p101
    %p103 = scmp.ne.s32.totalorder %s95, %s97
    %p104 = scmp.eq.s32.totalorder %s19, 1
    %p105 = por %p103, %p104
    %p106 = scmp.ne.s32.totalorder %s97, %s98
    %p107 = scmp.eq.s32.totalorder %s19, 0
    %p108 = por %p106, %p107
    %p109 = scmp.ne.s32.totalorder %s97, %s98
    %p110 = scmp.eq.s32.totalorder %s20, 1
    %p111 = por %p109, %p110
    %p113 = scmp.ne.s32.totalorder %s98, %s112
    %p114 = scmp.eq.s32.totalorder %s20, 0
    %p115 = por %p113, %p114
    %s117 = sadd.s32 %s116, 1
    %p120 = scmp.eq.s32.totalorder %s14, 1
    %p121 = scmp.ne.s32.totalorder %s116, %s118
    %p122 = scmp.eq.s32.totalorder %s14, 0
    %p123 = por %p121, %p122
    %p124 = scmp.ne.s32.totalorder %s116, %s118
    %p125 = scmp.eq.s32.totalorder %s19, 1
    %p126 = por %p124, %p125
    %p127 = scmp.ne.s32.totalorder %s118, %s119
    %p128 = scmp.eq.s32.totalorder %s19, 0
    %p129 = por %p127, %p128
    %p130 = scmp.ne.s32.totalorder %s118, %s119
    %p131 = scmp.eq.s32.totalorder %s20, 1
    %p132 = por %p130, %p131
    %p134 = scmp.ne.s32.totalorder %s119, %s133
    %p135 = scmp.eq.s32.totalorder %s20, 0
    %p136 = por %p134, %p135
    %s138 = sadd.s32 %s137, 1
    %p141 = scmp.eq.s32.totalorder %s14, 1
    %p142 = scmp.ne.s32.totalorder %s137, %s139
    %p143 = scmp.eq.s32.totalorder %s14, 0
    %p144 = por %p142, %p143
    %p145 = scmp.ne.s32.totalorder %s137, %s139
    %p146 = scmp.eq.s32.totalorder %s19, 1
    %p147 = por %p145, %p146
    %p148 = scmp.ne.s32.totalorder %s139, %s140
    %p149 = scmp.eq.s32.totalorder %s19, 0
    %p150 = por %p148, %p149
    %p151 = scmp.ne.s32.totalorder %s139, %s140
    %p152 = scmp.eq.s32.totalorder %s20, 1
    %p153 = por %p151, %p152
    %p155 = scmp.ne.s32.totalorder %s140, %s154
    %p156 = scmp.eq.s32.totalorder %s20, 0
    %p157 = por %p155, %p156
    %s159 = sadd.s32 %s158, 1
    %p162 = scmp.eq.s32.totalorder %s14, 1
    %p163 = scmp.ne.s32.totalorder %s158, %s160
    %p164 = scmp.eq.s32.totalorder %s14, 0
    %p165 = por %p163, %p164
    %p166 = scmp.ne.s32.totalorder %s158, %s160
    %p167 = scmp.eq.s32.totalorder %s19, 1
    %p168 = por %p166, %p167
    %p169 = scmp.ne.s32.totalorder %s160, %s161
    %p170 = scmp.eq.s32.totalorder %s19, 0
    %p171 = por %p169, %p170
    %p172 = scmp.ne.s32.totalorder %s160, %s161
    %p173 = scmp.eq.s32.totalorder %s20, 1
    %p174 = por %p172, %p173
    %p176 = scmp.ne.s32.totalorder %s161, %s175
    %p177 = scmp.eq.s32.totalorder %s20, 0
    %p178 = por %p176, %p177
    %s180 = sadd.s32 %s179, 1
    %p183 = scmp.eq.s32.totalorder %s14, 1
    %p184 = scmp.ne.s32.totalorder %s179, %s181
    %p185 = scmp.eq.s32.totalorder %s14, 0
    %p186 = por %p184, %p185
    %p187 = scmp.ne.s32.totalorder %s179, %s181
    %p188 = scmp.eq.s32.totalorder %s19, 1
    %p189 = por %p187, %p188
    %p190 = scmp.ne.s32.totalorder %s181, %s182
    %p191 = scmp.eq.s32.totalorder %s19, 0
    %p192 = por %p190, %p191
    %p193 = scmp.ne.s32.totalorder %s181, %s182
    %p194 = scmp.eq.s32.totalorder %s20, 1
    %p195 = por %p193, %p194
    %p197 = scmp.ne.s32.totalorder %s182, %s196
    %p198 = scmp.eq.s32.totalorder %s20, 0
    %p199 = por %p197, %p198
    %s200 = ssub.s32 %s14, %s21
    %p201 = scmp.eq.s32.totalorder %s200, 0
    %s203 = sadd.s32 %s202, 1
    %s204 = scalar_select %p201, %s202, %s203
    %p207 = pneg %p201
    %p208 = scmp.eq.s32.totalorder %s14, 1
    %p209 = por %p207, %p208
    %p210 = scmp.ne.s32.totalorder %s202, %s205
    %p211 = scmp.eq.s32.totalorder %s14, 0
    %p212 = por %p210, %p211
    %p213 = scmp.ne.s32.totalorder %s202, %s205
    %p214 = scmp.eq.s32.totalorder %s19, 1
    %p215 = por %p213, %p214
    %p216 = scmp.ne.s32.totalorder %s205, %s206
    %p217 = scmp.eq.s32.totalorder %s19, 0
    %p218 = por %p216, %p217
    %p219 = scmp.ne.s32.totalorder %s205, %s206
    %p220 = scmp.eq.s32.totalorder %s20, 1
    %p221 = por %p219, %p220
    %p223 = scmp.ne.s32.totalorder %s206, %s222
    %p224 = scmp.eq.s32.totalorder %s20, 0
    %p225 = por %p223, %p224
    %p226 = scmp.le.s32.totalorder 1, %s14
    %p227 = scmp.lt.s32.totalorder %s14, 3
    %p228 = pnand %p226, %p227
    %p229 = pneg %p228
    // Predicated region
    $region9: #{simple_transition_forward.1} parent=5 // pred_check
      _
    $region10: #{simple_transition_forward.1} parent=5 // pred_check_branch
      %231 = sbr.rel (%p228) target = $region12
    $region11: #{simple_transition_forward.1} parent=5 // pred_region
      %s232 = ssub.s32 %s14, 1
      // Predicated region
      $region13: #{simple_transition_forward.1} parent=11 // pred_check
        %p233 = pneg %p87
      $region14: #{simple_transition_forward.1} parent=11 // pred_check_branch
        %235 = sbr.rel (%p233) target = $region16
      $region15: #{simple_transition_forward.1} parent=11 // pred_region
        _
      $region16: #{simple_transition_forward.1} parent=11 // pred_fallthru
        _
      // Predicated region
      $region17: #{simple_transition_forward.1} parent=11 // pred_check
        %p236 = pneg %p108
      $region18: #{simple_transition_forward.1} parent=11 // pred_check_branch
        %238 = sbr.rel (%p236) target = $region20
      $region19: #{simple_transition_forward.1} parent=11 // pred_region
        _
      $region20: #{simple_transition_forward.1} parent=11 // pred_fallthru
        _
      // Predicated region
      $region21: #{simple_transition_forward.1} parent=11 // pred_check
        %p239 = pneg %p129
      $region22: #{simple_transition_forward.1} parent=11 // pred_check_branch
        %241 = sbr.rel (%p239) target = $region24
      $region23: #{simple_transition_forward.1} parent=11 // pred_region
        _
      $region24: #{simple_transition_forward.1} parent=11 // pred_fallthru
        _
      // Predicated region
      $region25: #{simple_transition_forward.1} parent=11 // pred_check
        %p242 = pneg %p150
      $region26: #{simple_transition_forward.1} parent=11 // pred_check_branch
        %244 = sbr.rel (%p242) target = $region28
      $region27: #{simple_transition_forward.1} parent=11 // pred_region
        _
      $region28: #{simple_transition_forward.1} parent=11 // pred_fallthru
        _
      // Predicated region
      $region29: #{simple_transition_forward.1} parent=11 // pred_check
        %p245 = pneg %p171
      $region30: #{simple_transition_forward.1} parent=11 // pred_check_branch
        %247 = sbr.rel (%p245) target = $region32
      $region31: #{simple_transition_forward.1} parent=11 // pred_region
        _
      $region32: #{simple_transition_forward.1} parent=11 // pred_fallthru
        _
      // Predicated region
      $region33: #{simple_transition_forward.1} parent=11 // pred_check
        %p248 = pneg %p192
      $region34: #{simple_transition_forward.1} parent=11 // pred_check_branch
        %250 = sbr.rel (%p248) target = $region36
      $region35: #{simple_transition_forward.1} parent=11 // pred_region
        _
      $region36: #{simple_transition_forward.1} parent=11 // pred_fallthru
        _
    $region12: #{simple_transition_forward.1} parent=5 // pred_fallthru
      _
    %p251 = scmp.lt.s32.totalorder %s14, 2
    // Predicated region
    $region37: #{simple_transition_forward.1} parent=5 // pred_check
      %p252 = pneg %p251
    $region38: #{simple_transition_forward.1} parent=5 // pred_check_branch
      %254 = sbr.rel (%p252) target = $region40
    $region39: #{simple_transition_forward.1} parent=5 // pred_region
      // Predicated region
      $region41: #{simple_transition_forward.1} parent=39 // pred_check
        %p255 = pneg %p34
      $region42: #{simple_transition_forward.1} parent=39 // pred_check_branch
        %257 = sbr.rel (%p255) target = $region44
      $region43: #{simple_transition_forward.1} parent=39 // pred_region
        %p258 = scmp.lt.s32.totalorder %s14, 1
        %s259 = scalar_select %p258, %s14, 1
        %s260 = smul.addr %s259, 8
        %s261 = scalar_lea.vmem %s0, %s260
      $region44: #{simple_transition_forward.1} parent=39 // pred_fallthru
        _
      // Predicated region
      $region45: #{simple_transition_forward.1} parent=39 // pred_check
        %p262 = pneg %p60
      $region46: #{simple_transition_forward.1} parent=39 // pred_check_branch
        %264 = sbr.rel (%p262) target = $region48
      $region47: #{simple_transition_forward.1} parent=39 // pred_region
        %p265 = scmp.lt.s32.totalorder %s14, 1
        %s266 = scalar_select %p265, %s14, 1
        %s267 = smul.addr %s266, 8
        %s268 = scalar_lea.vmem %s1, %s267
      $region48: #{simple_transition_forward.1} parent=39 // pred_fallthru
        _
    $region40: #{simple_transition_forward.1} parent=5 // pred_fallthru
      _
    %p269 = scmp.le.s32.totalorder 1, %s14
    %p270 = scmp.lt.s32.totalorder %s14, 3
    %p271 = pnand %p269, %p270
    %p272 = pneg %p271
    // Predicated region
    $region49: #{simple_transition_forward.1} parent=5 // pred_check
      _
    $region50: #{simple_transition_forward.1} parent=5 // pred_check_branch
      %274 = sbr.rel (%p271) target = $region52
    $region51: #{simple_transition_forward.1} parent=5 // pred_region
      %s275 = ssub.s32 %s14, 1
      %p276 = scmp.lt.s32.totalorder %s19, 1
      %s277 = scalar_select %p276, %s19, 1
      %s278 = smul.addr %s277, 8
      %s279 = scalar_lea.vmem %s0, %s278
      %p280 = pneg %p40
      %p281 = pneg %p37
      %p282 = scmp.lt.s32.totalorder %s19, 1
      %s283 = scalar_select %p282, %s19, 1
      %s284 = smul.addr %s283, 8
      %s285 = scalar_lea.vmem %s1, %s284
      %p286 = pneg %p66
      %p287 = pneg %p63
      %p288 = pneg %p87
      %p289 = pneg %p84
      %p290 = pneg %p108
      %p291 = pneg %p105
      %p292 = pneg %p129
      %p293 = pneg %p126
      %p294 = pneg %p150
      %p295 = pneg %p147
      %p296 = pneg %p171
      %p297 = pneg %p168
      %p298 = pneg %p192
      %p299 = pneg %p189
      %p300 = pneg %p218
      %p301 = pneg %p215
      %p302 = scmp.lt.s32.totalorder %s19, 1
      %s303 = scalar_select %p302, %s19, 1
      %s304 = smul.addr %s303, 8
      %s305 = scalar_lea.vmem %s8, %s304
      %p306 = scmp.lt.s32.totalorder %s19, 1
      %s307 = scalar_select %p306, %s19, 1
      %s308 = smul.addr %s307, 8
      %s309 = scalar_lea.vmem %s0, %s308
      %p310 = scmp.lt.s32.totalorder %s19, 1
      %s311 = scalar_select %p310, %s19, 1
      %s312 = smul.addr %s311, 8
      %s313 = scalar_lea.vmem %s1, %s312
      %p314 = scmp.lt.s32.totalorder %s19, 1
      %s315 = scalar_select %p314, %s19, 1
      %s316 = smul.addr %s315, 8
      %s317 = scalar_lea.vmem %s8, %s316
      %v319 = vld [vmem:[%s309] sm:$0xff]
      %vm320 = vcmask 130048
      %321 = vst.msk [vmem:[#allocation2] sm:$0xff] %vm320, %v319
      %v322 = vld [vmem:[%s313] sm:$0xff]
      %324 = vrot.lane.b32.xlu0 %v322, 16
      %v325 = vpop.permute.xlu0 %324
      %vm327 = vcmask 162944
      %328 = vst.msk [vmem:[#allocation2] sm:$0xff] %vm327, %v325
      %v329 = vld [vmem:[#allocation2] sm:$0xff]
      %v330 = vpack.c.bf16 %v329, %v329
      %v331 = vld [vmem:[%s3] sm:$0x7]
      %v332 = vld [vmem:[%s2] sm:$0xf]
      %v333 = vld [vmem:[%s2 + $0x4] sm:$0xf]
      %v334 = vld [vmem:[%s2 + $0x8] sm:$0x3]
      %v335 = vlaneseq
      %v336 = vshrl.u32 %v335, 7
      %v337 = vsub.s32 0, %v336
      %v338 = vrot.slane %v331, %v337
      %v342 = vunpack.c.l.b16 %v332
      %v343 = vunpack.c.l.b16 %v333
      %v344 = vunpack.c.l.b16 %v334
      %v345 = vpack.c.b16 %v343, %v342
      %v346 = vpack.c.b16 %v344, %v344
      %vm348 = vcmask 162816
      %v350 = vsel %vm348, %v330, 0
      %vm352 = vcmask 1041408
      %v354 = vsel %vm352, %v346, 0
      %356 = vmatprep.subr.bf16.mxu0 0
      %357 = vmatpush1.bf16.msra.mxu0 %v345
      %358 = vmatprep.subr.bf16.mxu0 0
      %359 = vmatpush1.bf16.msra.mxu0 %v354
      %360 = vmatprep.subr.bf16.mxu0 0
      %361 = vmatpush1.bf16.msra.mxu0 0
      %362 = vmatprep.subr.bf16.mxu0 0
      %363 = vmatpush1.bf16.msra.mxu0 0
      %364 = vmatprep.subr.bf16.mxu0 0
      %365 = vmatpush1.bf16.msra.mxu0 0
      %366 = vmatprep.subr.bf16.mxu0 0
      %367 = vmatpush1.bf16.msra.mxu0 0
      %368 = vmatprep.subr.bf16.mxu0 0
      %369 = vmatpush1.bf16.msra.mxu0 0
      %370 = vmatprep.subr.bf16.mxu0 0
      %371 = vmatpush1.bf16.msra.mxu0 0
      %372 = vmatprep.subr.bf16.mxu0 0
      %373 = vmatpush1.bf16.msra.mxu0 0
      %374 = vmatprep.subr.bf16.mxu0 0
      %375 = vmatpush1.bf16.msra.mxu0 0
      %376 = vmatprep.subr.bf16.mxu0 0
      %377 = vmatpush1.bf16.msra.mxu0 0
      %378 = vmatprep.subr.bf16.mxu0 0
      %379 = vmatpush1.bf16.msra.mxu0 0
      %380 = vmatprep.subr.bf16.mxu0 0
      %381 = vmatpush1.bf16.msra.mxu0 0
      %382 = vmatprep.subr.bf16.mxu0 0
      %383 = vmatpush1.bf16.msra.mxu0 0
      %384 = vmatprep.subr.bf16.mxu0 0
      %385 = vmatpush1.bf16.msra.mxu0 0
      %386 = vmatprep.subr.bf16.mxu0 0
      %387 = vmatpush1.bf16.msra.mxu0 0
      %388 = vmatprep.mubr.bf16.mxu0 0
      %389 = vmatmul.mubr.bf16.gmra.mrb[0].mxu0 %v350
      %v390 = vpop.f32.mrb[0].mxu0
      %v391 = vadd.f32 %v338, %v390
      %v392 = vpop.f32.mrb[0].mxu0
      %v393 = vpop.f32.mrb[0].mxu0
      %v394 = vpop.f32.mrb[0].mxu0
      %395 = vdwg.mxu0
      %vm396 = vcmask 523264
      %v397 = vsel %vm396, %v391, 0.0
      %398 = vadd.xlane.f32.xlu0 %v397
      %v399 = vpop.xlane.xlu0 %398
      %v400 = vrcp.pop 64.0
      %v401 = vmul.f32 %v399, %v400
      %v402 = vsub.f32 %v391, %v401
      %v403 = vmul.f32 %v402, %v402
      %v404 = vsel %vm396, %v403, 0.0
      %405 = vadd.xlane.f32.xlu0 %v404
      %v406 = vpop.xlane.xlu0 %405
      %v407 = vmul.f32 %v406, %v400
      %v408 = vadd.f32 %v407, 1e-05
      %v409 = vrsqrt.pop %v408
      %v410 = vmul.f32 %v402, %v409
      %v411 = vlaneseq
      %v412 = vshrl.u32 %v411, 7
      %v413 = vsub.s32 1, %v412
      %v414 = vrot.slane %v331, %v413
      %v415 = vmul.f32 %v410, %v414
      %v416 = vlaneseq
      %v417 = vshrl.u32 %v416, 7
      %v418 = vsub.s32 2, %v417
      %v419 = vrot.slane %v331, %v418
      %v420 = vadd.f32 %v415, %v419
      %vm421 = vcmp.gt.f32.partialorder %v420, 0.0
      %v422 = vmul.f32 %v420, 0.01
      %v423 = vsel %vm421, %v420, %v422
      %v424 = vld [vmem:[%s5] sm:$0x7]
      %v425 = vpack.c.bf16 %v423, %v423
      %v426 = vld [vmem:[%s4] sm:$0xf]
      %v427 = vld [vmem:[%s4 + $0x4] sm:$0xf]
      %v428 = vld [vmem:[%s4 + $0x8] sm:$0xf]
      %v429 = vld [vmem:[%s4 + $0xc] sm:$0xf]
      %v430 = vld [vmem:[%s4 + $0x10] sm:$0xf]
      %v431 = vld [vmem:[%s4 + $0x14] sm:$0xf]
      %v432 = vld [vmem:[%s4 + $0x18] sm:$0xf]
      %v433 = vld [vmem:[%s4 + $0x1c] sm:$0xf]
      %v434 = vlaneseq
      %v435 = vshrl.u32 %v434, 7
      %v436 = vsub.s32 0, %v435
      %v437 = vrot.slane %v424, %v436
      %v446 = vunpack.c.l.b16 %v426
      %v447 = vunpack.c.l.b16 %v427
      %v448 = vunpack.c.l.b16 %v428
      %v449 = vunpack.c.l.b16 %v429
      %v450 = vunpack.c.l.b16 %v430
      %v451 = vunpack.c.l.b16 %v431
      %v452 = vunpack.c.l.b16 %v432
      %v453 = vunpack.c.l.b16 %v433
      %v454 = vpack.c.b16 %v447, %v446
      %v455 = vpack.c.b16 %v449, %v448
      %v456 = vpack.c.b16 %v451, %v450
      %v457 = vpack.c.b16 %v453, %v452
      %v463 = vsel %vm396, %v425, 0
      %465 = vmatprep.subr.bf16.mxu0 0
      %466 = vmatpush1.bf16.msra.mxu0 %v454
      %467 = vmatprep.subr.bf16.mxu0 0
      %468 = vmatpush1.bf16.msra.mxu0 %v455
      %469 = vmatprep.subr.bf16.mxu0 0
      %470 = vmatpush1.bf16.msra.mxu0 %v456
      %471 = vmatprep.subr.bf16.mxu0 0
      %472 = vmatpush1.bf16.msra.mxu0 %v457
      %473 = vmatprep.subr.bf16.mxu0 0
      %474 = vmatpush1.bf16.msra.mxu0 0
      %475 = vmatprep.subr.bf16.mxu0 0
      %476 = vmatpush1.bf16.msra.mxu0 0
      %477 = vmatprep.subr.bf16.mxu0 0
      %478 = vmatpush1.bf16.msra.mxu0 0
      %479 = vmatprep.subr.bf16.mxu0 0
      %480 = vmatpush1.bf16.msra.mxu0 0
      %481 = vmatprep.subr.bf16.mxu0 0
      %482 = vmatpush1.bf16.msra.mxu0 0
      %483 = vmatprep.subr.bf16.mxu0 0
      %484 = vmatpush1.bf16.msra.mxu0 0
      %485 = vmatprep.subr.bf16.mxu0 0
      %486 = vmatpush1.bf16.msra.mxu0 0
      %487 = vmatprep.subr.bf16.mxu0 0
      %488 = vmatpush1.bf16.msra.mxu0 0
      %489 = vmatprep.subr.bf16.mxu0 0
      %490 = vmatpush1.bf16.msra.mxu0 0
      %491 = vmatprep.subr.bf16.mxu0 0
      %492 = vmatpush1.bf16.msra.mxu0 0
      %493 = vmatprep.subr.bf16.mxu0 0
      %494 = vmatpush1.bf16.msra.mxu0 0
      %495 = vmatprep.subr.bf16.mxu0 0
      %496 = vmatpush1.bf16.msra.mxu0 0
      %497 = vmatprep.mubr.bf16.mxu0 0
      %498 = vmatmul.mubr.bf16.gmra.mrb[0].mxu0 %v463
      %v499 = vpop.f32.mrb[0].mxu0
      %v500 = vadd.f32 %v437, %v499
      %v501 = vpop.f32.mrb[0].mxu0
      %v502 = vpop.f32.mrb[0].mxu0
      %v503 = vpop.f32.mrb[0].mxu0
      %504 = vdwg.mxu0
      %v505 = vsel %vm396, %v500, 0.0
      %506 = vadd.xlane.f32.xlu0 %v505
      %v507 = vpop.xlane.xlu0 %506
      %v508 = vmul.f32 %v507, %v400
      %v509 = vsub.f32 %v500, %v508
      %v510 = vmul.f32 %v509, %v509
      %v511 = vsel %vm396, %v510, 0.0
      %512 = vadd.xlane.f32.xlu0 %v511
      %v513 = vpop.xlane.xlu0 %512
      %v514 = vmul.f32 %v513, %v400
      %v515 = vadd.f32 %v514, 1e-05
      %v516 = vrsqrt.pop %v515
      %v517 = vmul.f32 %v509, %v516
      %v518 = vlaneseq
      %v519 = vshrl.u32 %v518, 7
      %v520 = vsub.s32 1, %v519
      %v521 = vrot.slane %v424, %v520
      %v522 = vmul.f32 %v517, %v521
      %v523 = vlaneseq
      %v524 = vshrl.u32 %v523, 7
      %v525 = vsub.s32 2, %v524
      %v526 = vrot.slane %v424, %v525
      %v527 = vadd.f32 %v522, %v526
      %v528 = vmax.f32 %v527, 0.0
      %v529 = vpack.c.bf16 %v528, %v528
      %v530 = vld [vmem:[%s6] sm:$0xf]
      %v531 = vld [vmem:[%s6 + $0x4] sm:$0xf]
      %v532 = vld [vmem:[%s6 + $0x8] sm:$0xf]
      %v533 = vld [vmem:[%s6 + $0xc] sm:$0xf]
      %v534 = vld [vmem:[%s6 + $0x10] sm:$0xf]
      %v535 = vld [vmem:[%s6 + $0x14] sm:$0xf]
      %v536 = vld [vmem:[%s6 + $0x18] sm:$0xf]
      %v537 = vld [vmem:[%s6 + $0x1c] sm:$0xf]
      %v538 = vld [vmem:[%s7] sm:$0x1]
      %v540 = vlaneseq
      %v541 = vshrl.u32 %v540, 7
      %v542 = vsub.s32 0, %v541
      %v543 = vrot.slane %v538, %v542
      %v553 = vunpack.c.l.b16 %v530
      %v554 = vunpack.c.l.b16 %v531
      %v555 = vunpack.c.l.b16 %v532
      %v556 = vunpack.c.l.b16 %v533
      %v557 = vunpack.c.l.b16 %v534
      %v558 = vunpack.c.l.b16 %v535
      %v559 = vunpack.c.l.b16 %v536
      %v560 = vunpack.c.l.b16 %v537
      %v561 = vpack.c.b16 %v554, %v553
      %v562 = vpack.c.b16 %v556, %v555
      %v563 = vpack.c.b16 %v558, %v557
      %v564 = vpack.c.b16 %v560, %v559
      %v570 = vsel %vm396, %v529, 0
      %572 = vmatprep.subr.bf16.mxu0 0
      %573 = vmatpush1.bf16.msra.mxu0 %v561
      %574 = vmatprep.subr.bf16.mxu0 0
      %575 = vmatpush1.bf16.msra.mxu0 %v562
      %576 = vmatprep.subr.bf16.mxu0 0
      %577 = vmatpush1.bf16.msra.mxu0 %v563
      %578 = vmatprep.subr.bf16.mxu0 0
      %579 = vmatpush1.bf16.msra.mxu0 %v564
      %580 = vmatprep.subr.bf16.mxu0 0
      %581 = vmatpush1.bf16.msra.mxu0 0
      %582 = vmatprep.subr.bf16.mxu0 0
      %583 = vmatpush1.bf16.msra.mxu0 0
      %584 = vmatprep.subr.bf16.mxu0 0
      %585 = vmatpush1.bf16.msra.mxu0 0
      %586 = vmatprep.subr.bf16.mxu0 0
      %587 = vmatpush1.bf16.msra.mxu0 0
      %588 = vmatprep.subr.bf16.mxu0 0
      %589 = vmatpush1.bf16.msra.mxu0 0
      %590 = vmatprep.subr.bf16.mxu0 0
      %591 = vmatpush1.bf16.msra.mxu0 0
      %592 = vmatprep.subr.bf16.mxu0 0
      %593 = vmatpush1.bf16.msra.mxu0 0
      %594 = vmatprep.subr.bf16.mxu0 0
      %595 = vmatpush1.bf16.msra.mxu0 0
      %596 = vmatprep.subr.bf16.mxu0 0
      %597 = vmatpush1.bf16.msra.mxu0 0
      %598 = vmatprep.subr.bf16.mxu0 0
      %599 = vmatpush1.bf16.msra.mxu0 0
      %600 = vmatprep.subr.bf16.mxu0 0
      %601 = vmatpush1.bf16.msra.mxu0 0
      %602 = vmatprep.subr.bf16.mxu0 0
      %603 = vmatpush1.bf16.msra.mxu0 0
      %604 = vmatprep.mubr.bf16.mxu0 0
      %605 = vmatmul.mubr.bf16.gmra.mrb[0].mxu0 %v570
      %v606 = vpop.f32.mrb[0].mxu0
      %v607 = vadd.f32 %v543, %v606
      %v608 = vpop.f32.mrb[0].mxu0
      %v609 = vpop.f32.mrb[0].mxu0
      %v610 = vpop.f32.mrb[0].mxu0
      %611 = vdwg.mxu0
      %v612 = vlaneseq
      %v613 = vand.u32 %v612, 127
      %vm614 = vcmp.eq.s32.totalorder %v613, 17
      %v615 = vand.u32 2147483647, %v607
      %v616 = vsub.f32 0.0, %v615
      %v617 = vmul.f32 %v616, 1.442695
      %v618 = vpow.pop %v617
      %v619 = vadd.f32 %v618, 1.0
      %v620 = vrcp.pop %v619
      %vm621 = vcmp.ge.f32.partialorder %v607, 0.0
      %v622 = vmul.f32 %v618, %v620
      %v623 = vsel %vm621, %v620, %v622
      %v624 = vsel %vm614, %v623, %v607
      %625 = vst [vmem:[%s317] sm:$0xff] %v624
      %p626 = scmp.lt.s32.totalorder %s19, 1
      %s627 = scalar_select %p626, %s19, 1
      %s628 = smul.addr %s627, 8
      %s629 = scalar_lea.vmem %s8, %s628
      // Predicated region
      $region53: #{simple_transition_forward.1} parent=51 // pred_check
        %p630 = pneg %p215
      $region54: #{simple_transition_forward.1} parent=51 // pred_check_branch
        %632 = sbr.rel (%p630) target = $region56
      $region55: #{simple_transition_forward.1} parent=51 // pred_region
        _
      $region56: #{simple_transition_forward.1} parent=51 // pred_fallthru
        _
    $region52: #{simple_transition_forward.1} parent=5 // pred_fallthru
      _
    %p633 = scmp.le.s32.totalorder 2, %s14
    // Predicated region
    $region57: #{simple_transition_forward.1} parent=5 // pred_check
      %p634 = pneg %p633
    $region58: #{simple_transition_forward.1} parent=5 // pred_check_branch
      %636 = sbr.rel (%p634) target = $region60
    $region59: #{simple_transition_forward.1} parent=5 // pred_region
      %s637 = ssub.s32 %s14, 2
      // Predicated region
      $region61: #{simple_transition_forward.1} parent=59 // pred_check
        %p638 = pneg %p221
      $region62: #{simple_transition_forward.1} parent=59 // pred_check_branch
        %640 = sbr.rel (%p638) target = $region64
      $region63: #{simple_transition_forward.1} parent=59 // pred_region
        %p641 = scmp.lt.s32.totalorder %s20, 1
        %s642 = scalar_select %p641, %s20, 1
        %s643 = smul.addr %s642, 8
        %s644 = scalar_lea.vmem %s8, %s643
      $region64: #{simple_transition_forward.1} parent=59 // pred_fallthru
        _
    $region60: #{simple_transition_forward.1} parent=5 // pred_fallthru
      _
  $region6: #{simple_transition_forward.1} parent=0 // loop_footer
    %s18 = sadd.s32 1, %s14
  $region7: #{simple_transition_forward.1} parent=0 // loop_footer_branch
    %13 = sbr.rel target = $region3
  $region8: #{simple_transition_forward.1} parent=0 // loop_exit
    _

</llo_original>
